<compile_context>
chip_gen: v7x
topology: tpu7x:2x2x1
jax: 0.10.0
libtpu: 0.0.40
codegen_flags: <defaults>
</compile_context>

<pallas_src>
import jax
import jax.numpy as jnp
from jax.experimental import pallas as pl
from jax.experimental.pallas import tpu as pltpu


ETA = 0.1


def _rigidity_kernel(kappa_ref, m_ref, md_ref, mr_ref,
                     out_ref, outd_ref, outr_ref,
                     m_new_ref, md_new_ref, mr_new_ref):
    # One (tm, n) row-tile per grid step; full rows -> block-local row sum.
    kappa = kappa_ref[...]

    # kappa / kappa.sum(dim=1, keepdim=True): one reciprocal per row + n^2 VPU
    # multiplies instead of n^2 divides (may differ from torch's divide by ~1 ULP).
    row_sum = jnp.sum(kappa, axis=1, keepdims=True)          # (tm, 1)
    kappa_norm = kappa * (1.0 / row_sum)

    # One mask at a time keeps live tile-sized temporaries to ~2
    # (kappa_norm + current sigmoid), minimizing vreg/VMEM pressure at large tm.
    sig = jax.nn.sigmoid(m_ref[...])
    out_ref[...] = kappa_norm * sig
    m_new_ref[...] = jnp.maximum(sig, ETA)      # reset_masks(): sigmoid(m).clamp(min=eta)

    sig = jax.nn.sigmoid(md_ref[...])
    outd_ref[...] = kappa_norm * sig
    md_new_ref[...] = jnp.maximum(sig, ETA)

    sig = jax.nn.sigmoid(mr_ref[...])
    outr_ref[...] = kappa_norm * sig
    mr_new_ref[...] = jnp.maximum(sig, ETA)


def adaptive_rigidity_mask_forward(kappa_ij, m_ij, m_ij_d, m_ij_r):
    """Returns (kappa_m, kappa_m_d, kappa_m_r, m_new, m_d_new, m_r_new).

    `neighbors` from the PyTorch signature is unused by the forward pass and
    therefore omitted.  The last three outputs are the reset mask parameters
    (aliased onto the mask inputs).
    """
    n = kappa_ij.shape[0]
    assert kappa_ij.shape == (n, n), "kappa_ij must be square"
    assert kappa_ij.dtype == jnp.float32, "kernel tiling/byte math assumes float32"
    for m in (m_ij, m_ij_d, m_ij_r):
        assert m.shape == (n, n) and m.dtype == kappa_ij.dtype, \
            "mask params must match kappa_ij shape and dtype"
    dtype = kappa_ij.dtype

    # ---- generation-aware VMEM / tile budget ---------------------------------
    try:
        vmem_cap = int(pltpu.get_tpu_info().vmem_capacity_bytes)
    except Exception:
        vmem_cap = 64 * 1024 * 1024  # most conservative (v7x-sized) fallback
    vmem_limit = int(vmem_cap * 0.75)   # ~96 MiB on 128 MiB parts, ~48 MiB on v7x
    tile_budget = int(vmem_cap * 0.65)  # leave headroom for compiler scratch

    # 4 inputs + 6 outputs, double-buffered -> 20 DMA tiles, plus ~4 live
    # tile-sized temporaries inside the body -> ~24 resident tile-equivalents.
    resident_tiles = 24
    bytes_per_row = n * 4  # f32, lane dim is the FULL (unpadded) row

    if resident_tiles * n * bytes_per_row <= tile_budget:
        tm = n  # single block == full array: no (8,128) divisibility required
    else:
        tm = (tile_budget // (resident_tiles * bytes_per_row)) // 8 * 8
        tm = max(8, min(tm, 2048))
    grid = (pl.cdiv(n, tm),)

    row_spec = pl.BlockSpec((tm, n), lambda i: (i, 0))
    out_sds = jax.ShapeDtypeStruct((n, n), dtype)

    cost = pl.CostEstimate(
        flops=5 * n * n,                 # sum, recip, 4 muls, 3 max (approx)
        transcendentals=3 * n * n,       # three sigmoids
        bytes_accessed=10 * n * n * 4,   # 4 inputs + 6 outputs, f32
    )

    # Mask inputs aliased onto the reset-mask outputs (pure in-place rewrite,
    # exactly what the torch module does).  Donate the mask args under jit to
    # avoid the defensive copy.
    return pl.pallas_call(
        _rigidity_kernel,
        grid=grid,
        in_specs=[row_spec] * 4,
        out_specs=[row_spec] * 6,
        out_shape=[out_sds] * 6,
        input_output_aliases={1: 3, 2: 4, 3: 5},
        cost_estimate=cost,
        compiler_params=pltpu.CompilerParams(
            dimension_semantics=("parallel",),
            vmem_limit_bytes=vmem_limit,
        ),
    )(kappa_ij, m_ij, m_ij_d, m_ij_r)


def _reference(kappa_ij, m_ij, m_ij_d, m_ij_r):
    norm = kappa_ij / jnp.sum(kappa_ij, axis=1, keepdims=True)
    sig = jax.nn.sigmoid
    return (norm * sig(m_ij), norm * sig(m_ij_d), norm * sig(m_ij_r),
            jnp.maximum(sig(m_ij), ETA),
            jnp.maximum(sig(m_ij_d), ETA),
            jnp.maximum(sig(m_ij_r), ETA))


if __name__ == "__main__":
    num_nodes = 16  # small synthetic problem

    key = jax.random.PRNGKey(0)
    # kappa_ij: positive pairwise rigidity coefficients (rows never sum to 0)
    kappa_ij = jax.random.uniform(key, (num_nodes, num_nodes),
                                  jnp.float32, 0.1, 1.0)

    # Parameters per __init__: zeros(num_nodes, num_nodes) for all three masks.
    m_ij = jnp.zeros((num_nodes, num_nodes), jnp.float32)
    m_ij_d = jnp.zeros((num_nodes, num_nodes), jnp.float32)
    m_ij_r = jnp.zeros((num_nodes, num_nodes), jnp.float32)

    fwd = jax.jit(adaptive_rigidity_mask_forward)
    results = jax.block_until_ready(fwd(kappa_ij, m_ij, m_ij_d, m_ij_r))

    refs = _reference(kappa_ij, m_ij, m_ij_d, m_ij_r)
    for got, ref in zip(results, refs):
        assert got.shape == ref.shape and got.dtype == ref.dtype
        assert jnp.allclose(got, ref, atol=1e-6, rtol=1e-6)

    print("KERNEL_OK")
</pallas_src>

<mosaic_0001>
module attributes {stable_mosaic.version = 11 : i64} {
  func.func @_rigidity_kernel(%arg0: i32, %arg1: memref<16x16xf32, #tpu.memory_space<vmem>>, %arg2: memref<16x16xf32, #tpu.memory_space<vmem>>, %arg3: memref<16x16xf32, #tpu.memory_space<vmem>>, %arg4: memref<16x16xf32, #tpu.memory_space<vmem>>, %arg5: memref<16x16xf32, #tpu.memory_space<vmem>>, %arg6: memref<16x16xf32, #tpu.memory_space<vmem>>, %arg7: memref<16x16xf32, #tpu.memory_space<vmem>>, %arg8: memref<16x16xf32, #tpu.memory_space<vmem>>, %arg9: memref<16x16xf32, #tpu.memory_space<vmem>>, %arg10: memref<16x16xf32, #tpu.memory_space<vmem>>) attributes {dimension_semantics = [#tpu.dimension_semantics<parallel>], iteration_bounds = array<i64: 1>, scalar_prefetch = 0 : i64, scratch_operands = 0 : i64, tpu.core_type = #tpu.core_type<tc>, window_params = [{transform_indices = @transform_0, window_bounds = array<i64: 16, 16>}, {transform_indices = @transform_1, window_bounds = array<i64: 16, 16>}, {transform_indices = @transform_2, window_bounds = array<i64: 16, 16>}, {transform_indices = @transform_3, window_bounds = array<i64: 16, 16>}, {transform_indices = @transform_4, window_bounds = array<i64: 16, 16>}, {transform_indices = @transform_5, window_bounds = array<i64: 16, 16>}, {transform_indices = @transform_6, window_bounds = array<i64: 16, 16>}, {transform_indices = @transform_7, window_bounds = array<i64: 16, 16>}, {transform_indices = @transform_8, window_bounds = array<i64: 16, 16>}, {transform_indices = @transform_9, window_bounds = array<i64: 16, 16>}]} {
    %c0 = arith.constant 0 : index
    %c0_0 = arith.constant 0 : index
    %0 = vector.load %arg1[%c0, %c0_0] : memref<16x16xf32, #tpu.memory_space<vmem>>, vector<16x16xf32>
    %cst = arith.constant dense<0.000000e+00> : vector<16xf32>
    %1 = vector.multi_reduction <add>, %0, %cst [1] : vector<16x16xf32> to vector<16xf32>
    %2 = vector.shape_cast %1 : vector<16xf32> to vector<16x1xf32>
    %cst_1 = arith.constant 1.000000e+00 : f32
    %3 = vector.broadcast %cst_1 : f32 to vector<16x1xf32>
    %4 = arith.divf %3, %2 : vector<16x1xf32>
    %5 = vector.broadcast %4 : vector<16x1xf32> to vector<16x16xf32>
    %6 = arith.mulf %0, %5 : vector<16x16xf32>
    %c0_2 = arith.constant 0 : index
    %c0_3 = arith.constant 0 : index
    %7 = vector.load %arg2[%c0_2, %c0_3] : memref<16x16xf32, #tpu.memory_space<vmem>>, vector<16x16xf32>
    %8 = arith.negf %7 : vector<16x16xf32>
    %9 = math.exp %8 : vector<16x16xf32>
    %cst_4 = arith.constant 1.000000e+00 : f32
    %10 = vector.broadcast %cst_4 : f32 to vector<16x16xf32>
    %11 = arith.addf %10, %9 : vector<16x16xf32>
    %12 = arith.divf %10, %11 : vector<16x16xf32>
    %13 = arith.mulf %6, %12 : vector<16x16xf32>
    %c0_5 = arith.constant 0 : index
    %c0_6 = arith.constant 0 : index
    %14 = vector.load %arg5[%c0_5, %c0_6] : memref<16x16xf32, #tpu.memory_space<vmem>>, vector<16x16xf32>
    tpu.vector_store %arg5[%c0_5, %c0_6], %13 {strides = array<i32>} : memref<16x16xf32, #tpu.memory_space<vmem>>, vector<16x16xf32>,
    %cst_7 = arith.constant 1.000000e-01 : f32
    %15 = vector.broadcast %cst_7 : f32 to vector<16x16xf32>
    %16 = arith.maximumf %12, %15 : vector<16x16xf32>
    %c0_8 = arith.constant 0 : index
    %c0_9 = arith.constant 0 : index
    %17 = vector.load %arg8[%c0_8, %c0_9] : memref<16x16xf32, #tpu.memory_space<vmem>>, vector<16x16xf32>
    tpu.vector_store %arg8[%c0_8, %c0_9], %16 {strides = array<i32>} : memref<16x16xf32, #tpu.memory_space<vmem>>, vector<16x16xf32>,
    %c0_10 = arith.constant 0 : index
    %c0_11 = arith.constant 0 : index
    %18 = vector.load %arg3[%c0_10, %c0_11] : memref<16x16xf32, #tpu.memory_space<vmem>>, vector<16x16xf32>
    %19 = arith.negf %18 : vector<16x16xf32>
    %20 = math.exp %19 : vector<16x16xf32>
    %cst_12 = arith.constant 1.000000e+00 : f32
    %21 = vector.broadcast %cst_12 : f32 to vector<16x16xf32>
    %22 = arith.addf %21, %20 : vector<16x16xf32>
    %23 = arith.divf %21, %22 : vector<16x16xf32>
    %24 = arith.mulf %6, %23 : vector<16x16xf32>
    %c0_13 = arith.constant 0 : index
    %c0_14 = arith.constant 0 : index
    %25 = vector.load %arg6[%c0_13, %c0_14] : memref<16x16xf32, #tpu.memory_space<vmem>>, vector<16x16xf32>
    tpu.vector_store %arg6[%c0_13, %c0_14], %24 {strides = array<i32>} : memref<16x16xf32, #tpu.memory_space<vmem>>, vector<16x16xf32>,
    %cst_15 = arith.constant 1.000000e-01 : f32
    %26 = vector.broadcast %cst_15 : f32 to vector<16x16xf32>
    %27 = arith.maximumf %23, %26 : vector<16x16xf32>
    %c0_16 = arith.constant 0 : index
    %c0_17 = arith.constant 0 : index
    %28 = vector.load %arg9[%c0_16, %c0_17] : memref<16x16xf32, #tpu.memory_space<vmem>>, vector<16x16xf32>
    tpu.vector_store %arg9[%c0_16, %c0_17], %27 {strides = array<i32>} : memref<16x16xf32, #tpu.memory_space<vmem>>, vector<16x16xf32>,
    %c0_18 = arith.constant 0 : index
    %c0_19 = arith.constant 0 : index
    %29 = vector.load %arg4[%c0_18, %c0_19] : memref<16x16xf32, #tpu.memory_space<vmem>>, vector<16x16xf32>
    %30 = arith.negf %29 : vector<16x16xf32>
    %31 = math.exp %30 : vector<16x16xf32>
    %cst_20 = arith.constant 1.000000e+00 : f32
    %32 = vector.broadcast %cst_20 : f32 to vector<16x16xf32>
    %33 = arith.addf %32, %31 : vector<16x16xf32>
    %34 = arith.divf %32, %33 : vector<16x16xf32>
    %35 = arith.mulf %6, %34 : vector<16x16xf32>
    %c0_21 = arith.constant 0 : index
    %c0_22 = arith.constant 0 : index
    %36 = vector.load %arg7[%c0_21, %c0_22] : memref<16x16xf32, #tpu.memory_space<vmem>>, vector<16x16xf32>
    tpu.vector_store %arg7[%c0_21, %c0_22], %35 {strides = array<i32>} : memref<16x16xf32, #tpu.memory_space<vmem>>, vector<16x16xf32>,
    %cst_23 = arith.constant 1.000000e-01 : f32
    %37 = vector.broadcast %cst_23 : f32 to vector<16x16xf32>
    %38 = arith.maximumf %34, %37 : vector<16x16xf32>
    %c0_24 = arith.constant 0 : index
    %c0_25 = arith.constant 0 : index
    %39 = vector.load %arg10[%c0_24, %c0_25] : memref<16x16xf32, #tpu.memory_space<vmem>>, vector<16x16xf32>
    tpu.vector_store %arg10[%c0_24, %c0_25], %38 {strides = array<i32>} : memref<16x16xf32, #tpu.memory_space<vmem>>, vector<16x16xf32>,
    return
  }
  func.func @transform_0(%arg0: i32) -> (i32, i32) {
    %c0_i32 = arith.constant 0 : i32
    %c0_i32_0 = arith.constant 0 : i32
    return %arg0, %c0_i32 : i32, i32
  }
  func.func @transform_1(%arg0: i32) -> (i32, i32) {
    %c0_i32 = arith.constant 0 : i32
    %c0_i32_0 = arith.constant 0 : i32
    return %arg0, %c0_i32 : i32, i32
  }
  func.func @transform_2(%arg0: i32) -> (i32, i32) {
    %c0_i32 = arith.constant 0 : i32
    %c0_i32_0 = arith.constant 0 : i32
    return %arg0, %c0_i32 : i32, i32
  }
  func.func @transform_3(%arg0: i32) -> (i32, i32) {
    %c0_i32 = arith.constant 0 : i32
    %c0_i32_0 = arith.constant 0 : i32
    return %arg0, %c0_i32 : i32, i32
  }
  func.func @transform_4(%arg0: i32) -> (i32, i32) {
    %c0_i32 = arith.constant 0 : i32
    %c0_i32_0 = arith.constant 0 : i32
    return %arg0, %c0_i32 : i32, i32
  }
  func.func @transform_5(%arg0: i32) -> (i32, i32) {
    %c0_i32 = arith.constant 0 : i32
    %c0_i32_0 = arith.constant 0 : i32
    return %arg0, %c0_i32 : i32, i32
  }
  func.func @transform_6(%arg0: i32) -> (i32, i32) {
    %c0_i32 = arith.constant 0 : i32
    %c0_i32_0 = arith.constant 0 : i32
    return %arg0, %c0_i32 : i32, i32
  }
  func.func @transform_7(%arg0: i32) -> (i32, i32) {
    %c0_i32 = arith.constant 0 : i32
    %c0_i32_0 = arith.constant 0 : i32
    return %arg0, %c0_i32 : i32, i32
  }
  func.func @transform_8(%arg0: i32) -> (i32, i32) {
    %c0_i32 = arith.constant 0 : i32
    %c0_i32_0 = arith.constant 0 : i32
    return %arg0, %c0_i32 : i32, i32
  }
  func.func @transform_9(%arg0: i32) -> (i32, i32) {
    %c0_i32 = arith.constant 0 : i32
    %c0_i32_0 = arith.constant 0 : i32
    return %arg0, %c0_i32 : i32, i32
  }
}

</mosaic_0001>

<llo_original>
// kernel: adaptive_rigidity_mask_forward.1
$region0: #{adaptive_rigidity_mask_forward.1}
  #allocation0 [shape = 'u32[]', space=smem, size = 0x4, offset = 0x4, fixed_abs, tag = 'smem constant byte address 0x4 - core index']
  #allocation1 [shape = 'u32[144,128]{1,0:T(1,128)}', space=vmem, size = 0x12000, scoped, tag = 'internal scratch']
  %s0 = inlined_call_operand.vmem [shape: f32[16,16], index: 0, kind: input, shape index: {}]
  %s1 = inlined_call_operand.hbm [shape: f32[16,16], index: 1, kind: input, shape index: {}, may-alias: {1,7}]
  %s2 = inlined_call_operand.hbm [shape: f32[16,16], index: 2, kind: input, shape index: {}, may-alias: {2,8}]
  %s3 = inlined_call_operand.hbm [shape: f32[16,16], index: 3, kind: input, shape index: {}, may-alias: {3,9}]
  %s4 = inlined_call_operand.hbm [shape: f32[16,16], index: 4, kind: output, shape index: {0}]
  %s5 = inlined_call_operand.hbm [shape: f32[16,16], index: 5, kind: output, shape index: {1}]
  %s6 = inlined_call_operand.hbm [shape: f32[16,16], index: 6, kind: output, shape index: {2}]
  %s7 = inlined_call_operand.hbm [shape: f32[16,16], index: 7, kind: output, shape index: {3}, may-alias: {1,7}]
  %s8 = inlined_call_operand.hbm [shape: f32[16,16], index: 8, kind: output, shape index: {4}, may-alias: {2,8}]
  %s9 = inlined_call_operand.hbm [shape: f32[16,16], index: 9, kind: output, shape index: {5}, may-alias: {3,9}]
  %10 = xla_tuple %s4, %s5, %s6, %s7, %s8, %s9
  %s11 = sld [smem:[#allocation0]]
  $region78: #{adaptive_rigidity_mask_forward.1} parent=0
    _
  %s13 = ssub.s32 1, %s11
  %s14 = scalar_select 0, %s13, %s11
  $region1: #{adaptive_rigidity_mask_forward.1} parent=0
    #allocation2 [shape = 'u8[8192]{0}', space=vmem, size = 0x2000, scoped, tag = 'input window, operand 1, single buffered']
    #allocation3 [shape = 's32[1]{0}', space=sflag, size = 0x4, scoped, tag = 'scoped memory for adaptive_rigidity_mask_forward.1']
    #allocation4 [shape = 's32[1]{0}', space=sflag, size = 0x4, scoped, tag = 'scoped memory for adaptive_rigidity_mask_forward.1']
    #allocation5 [shape = 'u8[8192]{0}', space=vmem, size = 0x2000, scoped, tag = 'input window, operand 2, single buffered']
    #allocation6 [shape = 's32[1]{0}', space=sflag, size = 0x4, scoped, tag = 'scoped memory for adaptive_rigidity_mask_forward.1']
    #allocation7 [shape = 'u8[8192]{0}', space=vmem, size = 0x2000, scoped, tag = 'input window, operand 3, single buffered']
    #allocation8 [shape = 'u8[8192]{0}', space=vmem, size = 0x2000, scoped, tag = 'output window, operand 0, single buffered']
    #allocation9 [shape = 'u8[8192]{0}', space=vmem, size = 0x2000, scoped, tag = 'output window, operand 1, single buffered']
    #allocation10 [shape = 's32[1]{0}', space=sflag, size = 0x4, scoped, tag = 'scoped memory for adaptive_rigidity_mask_forward.1']
    #allocation11 [shape = 'u8[8192]{0}', space=vmem, size = 0x2000, scoped, tag = 'output window, operand 2, single buffered']
    #allocation12 [shape = 'u8[8192]{0}', space=vmem, size = 0x2000, scoped, tag = 'output window, operand 3, single buffered']
    #allocation13 [shape = 's32[1]{0}', space=sflag, size = 0x4, scoped, tag = 'scoped memory for adaptive_rigidity_mask_forward.1']
    #allocation14 [shape = 'u8[8192]{0}', space=vmem, size = 0x2000, scoped, tag = 'output window, operand 4, single buffered']
    #allocation15 [shape = 'u8[8192]{0}', space=vmem, size = 0x2000, scoped, tag = 'output window, operand 5, single buffered']
    #allocation16 [shape = 's32[1]{0}', space=sflag, size = 0x4, scoped, tag = 'scoped memory for adaptive_rigidity_mask_forward.1']
    %15 = vsyncpa [#allocation3], 0
    %16 = vsyncpa [#allocation6], 0
    %17 = vsyncpa [#allocation4], 0
    %18 = vsyncpa [#allocation10], 0
    %19 = vsyncpa [#allocation13], 0
    %20 = vsyncpa [#allocation16], 0
    // Predicated region
    $region2: #{adaptive_rigidity_mask_forward.1} parent=1 // pred_check
      _
    $region3: #{adaptive_rigidity_mask_forward.1} parent=1 // pred_check_branch
      %22 = sbr.rel (0) target = $region5
    $region4: #{adaptive_rigidity_mask_forward.1} parent=1 // pred_region
      _
    $region5: #{adaptive_rigidity_mask_forward.1} parent=1 // pred_fallthru
      _
    // Predicated region
    $region6: #{adaptive_rigidity_mask_forward.1} parent=1 // pred_check
      _
    $region7: #{adaptive_rigidity_mask_forward.1} parent=1 // pred_check_branch
      %24 = sbr.rel (0) target = $region9
    $region8: #{adaptive_rigidity_mask_forward.1} parent=1 // pred_region
      %s26 = ssub.s32 256, 256
      %27 = vsyncadd [#allocation3], %s26
      %s28 = sshll.u32 [#allocation2], 4
      %s29 = int_to_ptr.vmem [resolvable:$true] %s28
      %34 = dma.hbm_to_vmem [thread:$0]  %s1, 256, %s29, [#allocation3], 128, 128, 8
    $region9: #{adaptive_rigidity_mask_forward.1} parent=1 // pred_fallthru
      _
    // Predicated region
    $region10: #{adaptive_rigidity_mask_forward.1} parent=1 // pred_check
      _
    $region11: #{adaptive_rigidity_mask_forward.1} parent=1 // pred_check_branch
      %36 = sbr.rel (0) target = $region13
    $region12: #{adaptive_rigidity_mask_forward.1} parent=1 // pred_region
      %s38 = ssub.s32 256, 256
      %39 = vsyncadd [#allocation6], %s38
      %s40 = sshll.u32 [#allocation5], 4
      %s41 = int_to_ptr.vmem [resolvable:$true] %s40
      %46 = dma.hbm_to_vmem [thread:$0]  %s2, 256, %s41, [#allocation6], 128, 128, 8
    $region13: #{adaptive_rigidity_mask_forward.1} parent=1 // pred_fallthru
      _
    // Predicated region
    $region14: #{adaptive_rigidity_mask_forward.1} parent=1 // pred_check
      _
    $region15: #{adaptive_rigidity_mask_forward.1} parent=1 // pred_check_branch
      %48 = sbr.rel (0) target = $region17
    $region16: #{adaptive_rigidity_mask_forward.1} parent=1 // pred_region
      %s50 = ssub.s32 256, 256
      %51 = vsyncadd [#allocation6], %s50
      %s52 = sshll.u32 [#allocation7], 4
      %s53 = int_to_ptr.vmem [resolvable:$true] %s52
      %58 = dma.hbm_to_vmem [thread:$0]  %s3, 256, %s53, [#allocation6], 128, 128, 8
    $region17: #{adaptive_rigidity_mask_forward.1} parent=1 // pred_fallthru
      _
    // Predicated region
    $region18: #{adaptive_rigidity_mask_forward.1} parent=1 // pred_check
      _
    $region19: #{adaptive_rigidity_mask_forward.1} parent=1 // pred_check_branch
      %60 = sbr.rel (0) target = $region21
    $region20: #{adaptive_rigidity_mask_forward.1} parent=1 // pred_region
      %61 = dma.done [#allocation3], 256
    $region21: #{adaptive_rigidity_mask_forward.1} parent=1 // pred_fallthru
      _
    // Predicated region
    $region22: #{adaptive_rigidity_mask_forward.1} parent=1 // pred_check
      _
    $region23: #{adaptive_rigidity_mask_forward.1} parent=1 // pred_check_branch
      %63 = sbr.rel (0) target = $region25
    $region24: #{adaptive_rigidity_mask_forward.1} parent=1 // pred_region
      %64 = dma.done [#allocation6], 256
    $region25: #{adaptive_rigidity_mask_forward.1} parent=1 // pred_fallthru
      _
    // Predicated region
    $region26: #{adaptive_rigidity_mask_forward.1} parent=1 // pred_check
      _
    $region27: #{adaptive_rigidity_mask_forward.1} parent=1 // pred_check_branch
      %66 = sbr.rel (0) target = $region29
    $region28: #{adaptive_rigidity_mask_forward.1} parent=1 // pred_region
      %67 = dma.done [#allocation6], 256
    $region29: #{adaptive_rigidity_mask_forward.1} parent=1 // pred_fallthru
      _
    %v68 = vld [vmem:[%s0] sm:$0xff]
    %v69 = vld [vmem:[%s0 + $0x8] sm:$0xff]
    %vm70 = vcmask 130048
    %v71 = vsel %vm70, %v68, 0.0
    %72 = vadd.xlane.f32.xlu0 %v71
    %v73 = vpop.xlane.xlu0 %72
    %v74 = vsel %vm70, %v69, 0.0
    %75 = vadd.xlane.f32.xlu0 %v74
    %v76 = vpop.xlane.xlu0 %75
    %v77 = vrcp.pop %v73
    %v78 = vmul.f32 1.0, %v77
    %v79 = vrcp.pop %v76
    %v80 = vmul.f32 1.0, %v79
    %v81 = vmul.f32 %v68, %v78
    %v82 = vmul.f32 %v69, %v80
    %v83 = vld [vmem:[#allocation2] sm:$0xff]
    %v84 = vld [vmem:[#allocation2 + $0x8] sm:$0xff]
    %v85 = vxor.u32 %v83, 2147483648
    %v86 = vxor.u32 %v84, 2147483648
    %v87 = vmul.f32 %v85, 1.442695
    %v88 = vpow.pop %v87
    %v89 = vmul.f32 %v86, 1.442695
    %v90 = vpow.pop %v89
    %v91 = vadd.f32 %v88, 1.0
    %v92 = vadd.f32 %v90, 1.0
    %v93 = vrcp.pop %v91
    %v94 = vmul.f32 1.0, %v93
    %v95 = vrcp.pop %v92
    %v96 = vmul.f32 1.0, %v95
    %v97 = vmul.f32 %v81, %v94
    %v98 = vmul.f32 %v82, %v96
    %99 = vst.msk [vmem:[#allocation8] sm:$0xff] %vm70, %v97
    %100 = vst.msk [vmem:[#allocation8 + $0x8] sm:$0xff] %vm70, %v98
    %v101 = vmax.f32 %v94, 0.1
    %v102 = vmax.f32 %v96, 0.1
    %103 = vst.msk [vmem:[#allocation12] sm:$0xff] %vm70, %v101
    %104 = vst.msk [vmem:[#allocation12 + $0x8] sm:$0xff] %vm70, %v102
    %v105 = vld [vmem:[#allocation5] sm:$0xff]
    %v106 = vld [vmem:[#allocation5 + $0x8] sm:$0xff]
    %v107 = vxor.u32 %v105, 2147483648
    %v108 = vxor.u32 %v106, 2147483648
    %v109 = vmul.f32 %v107, 1.442695
    %v110 = vpow.pop %v109
    %v111 = vmul.f32 %v108, 1.442695
    %v112 = vpow.pop %v111
    %v113 = vadd.f32 %v110, 1.0
    %v114 = vadd.f32 %v112, 1.0
    %v115 = vrcp.pop %v113
    %v116 = vmul.f32 1.0, %v115
    %v117 = vrcp.pop %v114
    %v118 = vmul.f32 1.0, %v117
    %v119 = vmul.f32 %v81, %v116
    %v120 = vmul.f32 %v82, %v118
    %121 = vst.msk [vmem:[#allocation9] sm:$0xff] %vm70, %v119
    %122 = vst.msk [vmem:[#allocation9 + $0x8] sm:$0xff] %vm70, %v120
    %v123 = vmax.f32 %v116, 0.1
    %v124 = vmax.f32 %v118, 0.1
    %125 = vst.msk [vmem:[#allocation14] sm:$0xff] %vm70, %v123
    %126 = vst.msk [vmem:[#allocation14 + $0x8] sm:$0xff] %vm70, %v124
    %v127 = vld [vmem:[#allocation7] sm:$0xff]
    %v128 = vld [vmem:[#allocation7 + $0x8] sm:$0xff]
    %v129 = vxor.u32 %v127, 2147483648
    %v130 = vxor.u32 %v128, 2147483648
    %v131 = vmul.f32 %v129, 1.442695
    %v132 = vpow.pop %v131
    %v133 = vmul.f32 %v130, 1.442695
    %v134 = vpow.pop %v133
    %v135 = vadd.f32 %v132, 1.0
    %v136 = vadd.f32 %v134, 1.0
    %v137 = vrcp.pop %v135
    %v138 = vmul.f32 1.0, %v137
    %v139 = vrcp.pop %v136
    %v140 = vmul.f32 1.0, %v139
    %v141 = vmul.f32 %v81, %v138
    %v142 = vmul.f32 %v82, %v140
    %143 = vst.msk [vmem:[#allocation11] sm:$0xff] %vm70, %v141
    %144 = vst.msk [vmem:[#allocation11 + $0x8] sm:$0xff] %vm70, %v142
    %v145 = vmax.f32 %v138, 0.1
    %v146 = vmax.f32 %v140, 0.1
    %147 = vst.msk [vmem:[#allocation15] sm:$0xff] %vm70, %v145
    %148 = vst.msk [vmem:[#allocation15 + $0x8] sm:$0xff] %vm70, %v146
    // Predicated region
    $region30: #{adaptive_rigidity_mask_forward.1} parent=1 // pred_check
      _
    $region31: #{adaptive_rigidity_mask_forward.1} parent=1 // pred_check_branch
      %150 = sbr.rel (0) target = $region33
    $region32: #{adaptive_rigidity_mask_forward.1} parent=1 // pred_region
      %s152 = ssub.s32 256, 256
      %153 = vsyncadd [#allocation4], %s152
      %s154 = sshll.u32 [#allocation8], 4
      %s155 = int_to_ptr.vmem [resolvable:$true] %s154
      %160 = dma.vmem_to_hbm [thread:$0]  %s155, 256, %s4, [#allocation4], 128, 128, 8
    $region33: #{adaptive_rigidity_mask_forward.1} parent=1 // pred_fallthru
      _
    // Predicated region
    $region34: #{adaptive_rigidity_mask_forward.1} parent=1 // pred_check
      _
    $region35: #{adaptive_rigidity_mask_forward.1} parent=1 // pred_check_branch
      %162 = sbr.rel (0) target = $region37
    $region36: #{adaptive_rigidity_mask_forward.1} parent=1 // pred_region
      %s164 = ssub.s32 256, 256
      %165 = vsyncadd [#allocation10], %s164
      %s166 = sshll.u32 [#allocation9], 4
      %s167 = int_to_ptr.vmem [resolvable:$true] %s166
      %172 = dma.vmem_to_hbm [thread:$0]  %s167, 256, %s5, [#allocation10], 128, 128, 8
    $region37: #{adaptive_rigidity_mask_forward.1} parent=1 // pred_fallthru
      _
    // Predicated region
    $region38: #{adaptive_rigidity_mask_forward.1} parent=1 // pred_check
      _
    $region39: #{adaptive_rigidity_mask_forward.1} parent=1 // pred_check_branch
      %174 = sbr.rel (0) target = $region41
    $region40: #{adaptive_rigidity_mask_forward.1} parent=1 // pred_region
      %s176 = ssub.s32 256, 256
      %177 = vsyncadd [#allocation10], %s176
      %s178 = sshll.u32 [#allocation11], 4
      %s179 = int_to_ptr.vmem [resolvable:$true] %s178
      %184 = dma.vmem_to_hbm [thread:$0]  %s179, 256, %s6, [#allocation10], 128, 128, 8
    $region41: #{adaptive_rigidity_mask_forward.1} parent=1 // pred_fallthru
      _
    // Predicated region
    $region42: #{adaptive_rigidity_mask_forward.1} parent=1 // pred_check
      _
    $region43: #{adaptive_rigidity_mask_forward.1} parent=1 // pred_check_branch
      %186 = sbr.rel (0) target = $region45
    $region44: #{adaptive_rigidity_mask_forward.1} parent=1 // pred_region
      %s188 = ssub.s32 256, 256
      %189 = vsyncadd [#allocation13], %s188
      %s190 = sshll.u32 [#allocation12], 4
      %s191 = int_to_ptr.vmem [resolvable:$true] %s190
      %196 = dma.vmem_to_hbm [thread:$0]  %s191, 256, %s7, [#allocation13], 128, 128, 8
    $region45: #{adaptive_rigidity_mask_forward.1} parent=1 // pred_fallthru
      _
    // Predicated region
    $region46: #{adaptive_rigidity_mask_forward.1} parent=1 // pred_check
      _
    $region47: #{adaptive_rigidity_mask_forward.1} parent=1 // pred_check_branch
      %198 = sbr.rel (0) target = $region49
    $region48: #{adaptive_rigidity_mask_forward.1} parent=1 // pred_region
      %s200 = ssub.s32 256, 256
      %201 = vsyncadd [#allocation13], %s200
      %s202 = sshll.u32 [#allocation14], 4
      %s203 = int_to_ptr.vmem [resolvable:$true] %s202
      %208 = dma.vmem_to_hbm [thread:$0]  %s203, 256, %s8, [#allocation13], 128, 128, 8
    $region49: #{adaptive_rigidity_mask_forward.1} parent=1 // pred_fallthru
      _
    // Predicated region
    $region50: #{adaptive_rigidity_mask_forward.1} parent=1 // pred_check
      _
    $region51: #{adaptive_rigidity_mask_forward.1} parent=1 // pred_check_branch
      %210 = sbr.rel (0) target = $region53
    $region52: #{adaptive_rigidity_mask_forward.1} parent=1 // pred_region
      %s212 = ssub.s32 256, 256
      %213 = vsyncadd [#allocation16], %s212
      %s214 = sshll.u32 [#allocation15], 4
      %s215 = int_to_ptr.vmem [resolvable:$true] %s214
      %220 = dma.vmem_to_hbm [thread:$0]  %s215, 256, %s9, [#allocation16], 128, 128, 8
    $region53: #{adaptive_rigidity_mask_forward.1} parent=1 // pred_fallthru
      _
    // Predicated region
    $region54: #{adaptive_rigidity_mask_forward.1} parent=1 // pred_check
      _
    $region55: #{adaptive_rigidity_mask_forward.1} parent=1 // pred_check_branch
      %222 = sbr.rel (0) target = $region57
    $region56: #{adaptive_rigidity_mask_forward.1} parent=1 // pred_region
      %223 = dma.done [#allocation4], 256
    $region57: #{adaptive_rigidity_mask_forward.1} parent=1 // pred_fallthru
      _
    // Predicated region
    $region58: #{adaptive_rigidity_mask_forward.1} parent=1 // pred_check
      _
    $region59: #{adaptive_rigidity_mask_forward.1} parent=1 // pred_check_branch
      %225 = sbr.rel (0) target = $region61
    $region60: #{adaptive_rigidity_mask_forward.1} parent=1 // pred_region
      %226 = dma.done [#allocation10], 256
    $region61: #{adaptive_rigidity_mask_forward.1} parent=1 // pred_fallthru
      _
    // Predicated region
    $region62: #{adaptive_rigidity_mask_forward.1} parent=1 // pred_check
      _
    $region63: #{adaptive_rigidity_mask_forward.1} parent=1 // pred_check_branch
      %228 = sbr.rel (0) target = $region65
    $region64: #{adaptive_rigidity_mask_forward.1} parent=1 // pred_region
      %229 = dma.done [#allocation10], 256
    $region65: #{adaptive_rigidity_mask_forward.1} parent=1 // pred_fallthru
      _
    // Predicated region
    $region66: #{adaptive_rigidity_mask_forward.1} parent=1 // pred_check
      _
    $region67: #{adaptive_rigidity_mask_forward.1} parent=1 // pred_check_branch
      %231 = sbr.rel (0) target = $region69
    $region68: #{adaptive_rigidity_mask_forward.1} parent=1 // pred_region
      %232 = dma.done [#allocation13], 256
    $region69: #{adaptive_rigidity_mask_forward.1} parent=1 // pred_fallthru
      _
    // Predicated region
    $region70: #{adaptive_rigidity_mask_forward.1} parent=1 // pred_check
      _
    $region71: #{adaptive_rigidity_mask_forward.1} parent=1 // pred_check_branch
      %234 = sbr.rel (0) target = $region73
    $region72: #{adaptive_rigidity_mask_forward.1} parent=1 // pred_region
      %235 = dma.done [#allocation13], 256
    $region73: #{adaptive_rigidity_mask_forward.1} parent=1 // pred_fallthru
      _
    // Predicated region
    $region74: #{adaptive_rigidity_mask_forward.1} parent=1 // pred_check
      _
    $region75: #{adaptive_rigidity_mask_forward.1} parent=1 // pred_check_branch
      %237 = sbr.rel (0) target = $region77
    $region76: #{adaptive_rigidity_mask_forward.1} parent=1 // pred_region
      %238 = dma.done [#allocation16], 256
    $region77: #{adaptive_rigidity_mask_forward.1} parent=1 // pred_fallthru
      _
    %239 = vsyncpa [#allocation3], 1
    %240 = vsyncpa [#allocation6], 1
    %241 = vsyncpa [#allocation4], 1
    %242 = vsyncpa [#allocation10], 1
    %243 = vsyncpa [#allocation13], 1
    %244 = vsyncpa [#allocation16], 1

</llo_original>
